<compile_context>
chip_gen: v7x
topology: tpu7x:2x2x1
jax: 0.10.0
libtpu: 0.0.40
codegen_flags: <defaults>
</compile_context>

<pallas_src>
import functools
import math

import jax
import jax.numpy as jnp
from jax.experimental import pallas as pl
from jax.experimental.pallas import tpu as pltpu


def _round_up(x, m):
    return ((x + m - 1) // m) * m


def _cdiv(a, b):
    return -(-a // b)


def _pad2(x, rows, cols):
    r, c = x.shape
    if (r, c) == (rows, cols):
        return x                     # no padded copy for aligned shapes
    return jnp.pad(x, ((0, rows - r), (0, cols - c)))


def _vmem_cap_bytes():
    # Physical VMEM differs per generation (v5e/v6e: 128 MiB, v7x: 64 MiB).
    # Leave ~25% headroom for compiler internal scratch and semaphores.
    try:
        cap = pltpu.get_tpu_info().vmem_capacity_bytes
    except Exception:
        cap = 64 << 20               # conservative (v7x-sized) fallback
    return int(cap * 3 // 4)


# ----------------------------------------------------------------------------
# Kernels
# ----------------------------------------------------------------------------
def _v_proj_kernel(xn_ref, wv_ref, bv_ref, out_ref):
    """Fast path: softmax over a size-1 axis == 1.0 exactly, so the whole
    CrossAttention output is just the value projection num_feat @ Wv + bv."""
    out_ref[...] = (
        jnp.dot(xn_ref[...], wv_ref[...], preferred_element_type=jnp.float32)
        + bv_ref[...]
    ).astype(out_ref.dtype)


def _full_graph_kernel(xs_ref, xn_ref, wq_ref, bq_ref, wkv_ref, bkv_ref,
                       out_ref, *, d_orig, d_pad):
    """Literal-fidelity path: Q projection, fused K|V projection (one MXU
    weight push, wider N), scores over the singleton sequence axis, exact
    degenerate softmax (exp(0) == 1.0), weighted V."""
    q = jnp.dot(xs_ref[...], wq_ref[...],
                preferred_element_type=jnp.float32) + bq_ref[...]
    kv = jnp.dot(xn_ref[...], wkv_ref[...],
                 preferred_element_type=jnp.float32) + bkv_ref[...]
    k = kv[:, :d_pad]
    v = kv[:, d_pad:]
    # attn_scores = Q @ K^T over the singleton axis -> per-row dot(q, k).
    # Scale uses the ORIGINAL dim (torch's Q.size(-1)), not the padded one.
    scores = jnp.sum(q * k, axis=-1, keepdims=True) * (1.0 / math.sqrt(d_orig))
    # Softmax over a size-1 axis: exp(x - x) / sum == exp(0) == 1.0 EXACTLY.
    attn_w = jnp.exp(scores - scores)
    out_ref[...] = (attn_w * v).astype(out_ref.dtype)


# ----------------------------------------------------------------------------
# Builder: prepares weights once, returns a jitted forward callable.
# ----------------------------------------------------------------------------
def make_cross_attention(wq, bq, wk, bk, wv, bv, *,
                         compute_dtype=jnp.float32,
                         out_dtype=jnp.float32,
                         exact_graph=False,
                         block_m=512,
                         weight_vmem_target=16 << 20):
    """wq/wk/wv: (D, D), already transposed vs torch (y = x @ w + b matches
    torch's x @ W.T + b).  bq/bk/bv: (D,).  Returns f(smiles, num) -> (B, D)."""
    D = wv.shape[0]
    Dp = _round_up(D, 128)               # lane-dense last dim
    cd = jnp.dtype(compute_dtype)
    od = jnp.dtype(out_dtype)
    f32 = jnp.float32

    # ---- weight prep: runs ONCE here, never in the per-call path -----------
    wv_p = _pad2(wv, Dp, Dp).astype(cd)
    bv_p = _pad2(bv.reshape(1, D), 1, Dp).astype(f32)     # biases stay f32
    if exact_graph:
        wq_p = _pad2(wq, Dp, Dp).astype(cd)
        bq_p = _pad2(bq.reshape(1, D), 1, Dp).astype(f32)
        # Fuse K|V into one (Dp, 2*Dp) weight: single MXU weight push, wider N.
        wkv_p = jnp.concatenate(
            [_pad2(wk, Dp, Dp), _pad2(wv, Dp, Dp)], axis=1).astype(cd)
        bkv_p = jnp.concatenate(
            [_pad2(bk.reshape(1, D), 1, Dp), bv_p], axis=1)
    # TODO(synk): optional fp8-weight path (v7x MXU) / int8-weight path (v6e)
    # with per-output-channel dequant scales folded into the bias add.

    vmem_cap = _vmem_cap_bytes()

    def _forward(smiles_feat, num_feat):
        B = num_feat.shape[0]

        # Batch tiling: avoid pathological tail padding (B=257 -> TM=136, not
        # 256/512), and give the v7x megacore >= 2 grid steps when possible.
        n_m = max(1, _cdiv(B, block_m))
        if B >= 16:
            n_m = max(n_m, 2)
        TM = _round_up(_cdiv(B, n_m), 8)
        Bp = n_m * TM

        xn = _pad2(num_feat, Bp, Dp).astype(cd)

        if not exact_graph:
            # Optional N-tiling so a full (Dp, Dp) weight never has to be
            # resident in VMEM (matters for large D, esp. v7x's 64 MiB).
            if Dp * Dp * cd.itemsize <= weight_vmem_target:
                TN = Dp
            else:
                TN = 128
                for cand in (2048, 1024, 512, 256):
                    if Dp % cand == 0 and Dp * cand * cd.itemsize <= weight_vmem_target:
                        TN = cand
                        break
            n_n = Dp // TN
            grid = (n_m, n_n)
            # Constant-index weight/bias blocks: single-buffer them.
            wkw = dict(pipeline_mode=pl.Buffered(1)) if n_n == 1 else {}
            in_specs = [
                pl.BlockSpec((TM, Dp), lambda i, j: (i, 0)),
                pl.BlockSpec((Dp, TN), lambda i, j: (0, j), **wkw),
                pl.BlockSpec((1, TN), lambda i, j: (0, j), **wkw),
            ]
            out_specs = pl.BlockSpec((TM, TN), lambda i, j: (i, j))
            operands = (xn, wv_p, bv_p)
            kernel = _v_proj_kernel
            dims = ("parallel", "parallel")
            wbuf = 1 if n_n == 1 else 2
            vmem = (2 * TM * Dp * cd.itemsize            # xn, double buffered
                    + wbuf * Dp * TN * cd.itemsize       # Wv block(s)
                    + wbuf * 8 * TN * 4                  # bias (f32, sublane pad)
                    + 2 * TM * TN * od.itemsize)         # out, double buffered
        else:
            xs = _pad2(smiles_feat, Bp, Dp).astype(cd)
            grid = (n_m,)
            rep = dict(pipeline_mode=pl.Buffered(1))     # constant index maps
            in_specs = [
                pl.BlockSpec((TM, Dp), lambda i: (i, 0)),
                pl.BlockSpec((TM, Dp), lambda i: (i, 0)),
                pl.BlockSpec((Dp, Dp), lambda i: (0, 0), **rep),
                pl.BlockSpec((1, Dp), lambda i: (0, 0), **rep),
                pl.BlockSpec((Dp, 2 * Dp), lambda i: (0, 0), **rep),
                pl.BlockSpec((1, 2 * Dp), lambda i: (0, 0), **rep),
            ]
            out_specs = pl.BlockSpec((TM, Dp), lambda i: (i, 0))
            operands = (xs, xn, wq_p, bq_p, wkv_p, bkv_p)
            kernel = functools.partial(_full_graph_kernel, d_orig=D, d_pad=Dp)
            dims = ("parallel",)
            vmem = (2 * 2 * TM * Dp * cd.itemsize        # xs + xn, double buffered
                    + 3 * Dp * Dp * cd.itemsize          # Wq + fused W[k|v], single
                    + 3 * 8 * Dp * 4                     # biases (f32)
                    + 2 * TM * Dp * od.itemsize          # out, double buffered
                    + 3 * TM * Dp * 4)                   # f32 intermediates q, kv

        vmem_limit = int(min(max(vmem + (2 << 20), 4 << 20), vmem_cap))

        out = pl.pallas_call(
            kernel,
            out_shape=jax.ShapeDtypeStruct((Bp, Dp), od),
            grid=grid,
            in_specs=in_specs,
            out_specs=out_specs,
            compiler_params=pltpu.CompilerParams(
                dimension_semantics=dims,
                vmem_limit_bytes=vmem_limit,
            ),
        )(*operands)

        if Bp == B and Dp == D:
            return out                   # no post-kernel slice copy
        return out[:B, :D]

    return jax.jit(_forward)


# ----------------------------------------------------------------------------
# Pure-JAX reference mirroring the torch forward exactly.
# ----------------------------------------------------------------------------
def cross_attention_ref(smiles_feat, num_feat, wq, bq, wk, bk, wv, bv):
    q = (smiles_feat @ wq + bq)[:, None, :]          # (B, 1, D)
    k = (num_feat @ wk + bk)[:, None, :]
    v = (num_feat @ wv + bv)[:, None, :]
    scores = jnp.einsum('bqd,bkd->bqk', q, k) / math.sqrt(q.shape[-1])
    weights = jax.nn.softmax(scores, axis=-1)
    out = jnp.einsum('bqk,bkd->bqd', weights, v)
    return out[:, 0, :]


if __name__ == "__main__":
    B, D = 2, 32

    key = jax.random.PRNGKey(0)
    ks = jax.random.split(key, 8)

    # Deterministic parameter init (torch Linear-style uniform bound).
    bound = 1.0 / math.sqrt(D)
    wq = jax.random.uniform(ks[0], (D, D), jnp.float32, -bound, bound)
    bq = jax.random.uniform(ks[1], (D,), jnp.float32, -bound, bound)
    wk = jax.random.uniform(ks[2], (D, D), jnp.float32, -bound, bound)
    bk = jax.random.uniform(ks[3], (D,), jnp.float32, -bound, bound)
    wv = jax.random.uniform(ks[4], (D, D), jnp.float32, -bound, bound)
    bv = jax.random.uniform(ks[5], (D,), jnp.float32, -bound, bound)

    smiles_feat = jax.random.normal(ks[6], (B, D), jnp.float32)
    num_feat = jax.random.normal(ks[7], (B, D), jnp.float32)

    ref = cross_attention_ref(smiles_feat, num_feat, wq, bq, wk, bk, wv, bv)

    # 1) Default fast path (f32): mathematically identical to the torch graph.
    attn = make_cross_attention(wq, bq, wk, bk, wv, bv)
    out = jax.block_until_ready(attn(smiles_feat, num_feat))
    assert out.shape == (B, D)
    assert jnp.allclose(out, ref, atol=1e-5, rtol=1e-5), "fast path mismatch"

    # 2) Literal-fidelity path (Q/K/scores kept); degenerate softmax is now an
    #    exact 1.0, so the tolerance matches the fast path.
    attn_full = make_cross_attention(wq, bq, wk, bk, wv, bv, exact_graph=True)
    out_full = jax.block_until_ready(attn_full(smiles_feat, num_feat))
    assert jnp.allclose(out_full, ref, atol=1e-5, rtol=1e-5), "full graph mismatch"

    # 3) bf16 weights/activations (halves HBM weight traffic), f32 MXU accum
    #    and f32 output.
    attn_bf16 = make_cross_attention(wq, bq, wk, bk, wv, bv,
                                     compute_dtype=jnp.bfloat16)
    out_bf16 = jax.block_until_ready(attn_bf16(smiles_feat, num_feat))
    assert jnp.allclose(out_bf16, ref, atol=5e-2, rtol=5e-2), "bf16 path mismatch"

    print("KERNEL_OK")
</pallas_src>

<mosaic_0001>
module attributes {stable_mosaic.version = 11 : i64} {
  func.func @_v_proj_kernel(%arg0: i32, %arg1: i32, %arg2: memref<8x128xf32, #tpu.memory_space<vmem>>, %arg3: memref<128x128xf32, #tpu.memory_space<vmem>>, %arg4: memref<1x128xf32, #tpu.memory_space<vmem>>, %arg5: memref<8x128xf32, #tpu.memory_space<vmem>>) attributes {dimension_semantics = [#tpu.dimension_semantics<parallel>, #tpu.dimension_semantics<parallel>], iteration_bounds = array<i64: 1, 1>, scalar_prefetch = 0 : i64, scratch_operands = 0 : i64, tpu.core_type = #tpu.core_type<tc>, window_params = [{transform_indices = @transform_0, window_bounds = array<i64: 8, 128>}, {pipeline_mode = #tpu.pipeline_mode<synchronous>, transform_indices = @transform_1, window_bounds = array<i64: 128, 128>}, {pipeline_mode = #tpu.pipeline_mode<synchronous>, transform_indices = @transform_2, window_bounds = array<i64: 1, 128>}, {transform_indices = @transform_3, window_bounds = array<i64: 8, 128>}]} {
    %c0 = arith.constant 0 : index
    %c0_0 = arith.constant 0 : index
    %0 = vector.load %arg2[%c0, %c0_0] : memref<8x128xf32, #tpu.memory_space<vmem>>, vector<8x128xf32>
    %c0_1 = arith.constant 0 : index
    %c0_2 = arith.constant 0 : index
    %1 = vector.load %arg3[%c0_1, %c0_2] : memref<128x128xf32, #tpu.memory_space<vmem>>, vector<128x128xf32>
    %cst = arith.constant dense<0.000000e+00> : vector<8x128xf32>
    %2 = tpu.matmul %0, %1, %cst {dimension_numbers = #tpu.dot_dimension_numbers<[1], [0], [0], [1], [0, 0, 1, 1], [], []>} : vector<8x128xf32>, vector<128x128xf32>, vector<8x128xf32> -> vector<8x128xf32>
    %c0_3 = arith.constant 0 : index
    %c0_4 = arith.constant 0 : index
    %3 = vector.load %arg4[%c0_3, %c0_4] : memref<1x128xf32, #tpu.memory_space<vmem>>, vector<1x128xf32>
    %4 = vector.broadcast %3 : vector<1x128xf32> to vector<8x128xf32>
    %5 = arith.addf %2, %4 : vector<8x128xf32>
    %c0_5 = arith.constant 0 : index
    %c0_6 = arith.constant 0 : index
    %6 = vector.load %arg5[%c0_5, %c0_6] : memref<8x128xf32, #tpu.memory_space<vmem>>, vector<8x128xf32>
    tpu.vector_store %arg5[%c0_5, %c0_6], %5 {strides = array<i32>} : memref<8x128xf32, #tpu.memory_space<vmem>>, vector<8x128xf32>,
    return
  }
  func.func @transform_0(%arg0: i32, %arg1: i32) -> (i32, i32) {
    %c0_i32 = arith.constant 0 : i32
    %c0_i32_0 = arith.constant 0 : i32
    return %arg0, %c0_i32 : i32, i32
  }
  func.func @transform_1(%arg0: i32, %arg1: i32) -> (i32, i32) {
    %c0_i32 = arith.constant 0 : i32
    %c0_i32_0 = arith.constant 0 : i32
    return %c0_i32, %arg1 : i32, i32
  }
  func.func @transform_2(%arg0: i32, %arg1: i32) -> (i32, i32) {
    %c0_i32 = arith.constant 0 : i32
    %c0_i32_0 = arith.constant 0 : i32
    return %c0_i32, %arg1 : i32, i32
  }
  func.func @transform_3(%arg0: i32, %arg1: i32) -> (i32, i32) {
    %c0_i32 = arith.constant 0 : i32
    return %arg0, %arg1 : i32, i32
  }
}

</mosaic_0001>

<llo_original>
// kernel: _forward.1
$region0: #{_forward.1}
  #allocation0 [shape = 'u32[]', space=smem, size = 0x4, offset = 0x4, fixed_abs, tag = 'smem constant byte address 0x4 - core index']
  #allocation1 [shape = 'u32[144,128]{1,0:T(1,128)}', space=vmem, size = 0x12000, scoped, tag = 'internal scratch']
  %s0 = inlined_call_operand.vmem [shape: f32[8,128], index: 0, kind: input, shape index: {}]
  %s1 = inlined_call_operand.hbm [shape: f32[128,128], index: 1, kind: input, shape index: {}]
  %s2 = inlined_call_operand.vmem [shape: f32[1,128], index: 2, kind: input, shape index: {}]
  %s3 = inlined_call_operand.vmem [shape: f32[8,128], index: 3, kind: output, shape index: {}]
  %s4 = sld [smem:[#allocation0]]
  $region26: #{_forward.1} parent=0
    _
  %s6 = ssub.s32 1, %s4
  %s7 = scalar_select 0, %s6, %s4
  $region1: #{_forward.1} parent=0
    #allocation2 [shape = 'u8[65536]{0}', space=vmem, size = 0x10000, scoped, tag = 'input window, operand 1, single buffered']
    #allocation3 [shape = 's32[1]{0}', space=sflag, size = 0x4, scoped, tag = 'scoped memory for _forward.1']
    %8 = vsyncpa [#allocation3], 0
    // Predicated region
    $region2: #{_forward.1} parent=1 // pred_check
      _
    $region3: #{_forward.1} parent=1 // pred_check_branch
      %10 = sbr.rel (0) target = $region5
    $region4: #{_forward.1} parent=1 // pred_region
      _
    $region5: #{_forward.1} parent=1 // pred_fallthru
      _
    // Predicated region
    $region6: #{_forward.1} parent=1 // pred_check
      _
    $region7: #{_forward.1} parent=1 // pred_check_branch
      %12 = sbr.rel (0) target = $region9
    $region8: #{_forward.1} parent=1 // pred_region
      %s14 = ssub.s32 2048, 2048
      %15 = vsyncadd [#allocation3], %s14
      %s16 = sshll.u32 [#allocation2], 4
      %s17 = int_to_ptr.vmem [resolvable:$true] %s16
      %22 = dma.hbm_to_vmem [thread:$0]  %s1, 2048, %s17, [#allocation3], 128, 128, 8
    $region9: #{_forward.1} parent=1 // pred_fallthru
      _
    // Predicated region
    $region10: #{_forward.1} parent=1 // pred_check
      _
    $region11: #{_forward.1} parent=1 // pred_check_branch
      %24 = sbr.rel (0) target = $region13
    $region12: #{_forward.1} parent=1 // pred_region
      _
    $region13: #{_forward.1} parent=1 // pred_fallthru
      _
    // Predicated region
    $region14: #{_forward.1} parent=1 // pred_check
      _
    $region15: #{_forward.1} parent=1 // pred_check_branch
      %26 = sbr.rel (0) target = $region17
    $region16: #{_forward.1} parent=1 // pred_region
      %27 = dma.done [#allocation3], 2048
    $region17: #{_forward.1} parent=1 // pred_fallthru
      _
    %v28 = vld [vmem:[%s0] sm:$0xff]
    %v29 = vld [vmem:[#allocation2] sm:$0xff]
    %v30 = vld [vmem:[#allocation2 + $0x8] sm:$0xff]
    %v31 = vld [vmem:[#allocation2 + $0x10] sm:$0xff]
    %v32 = vld [vmem:[#allocation2 + $0x18] sm:$0xff]
    %v33 = vld [vmem:[#allocation2 + $0x20] sm:$0xff]
    %v34 = vld [vmem:[#allocation2 + $0x28] sm:$0xff]
    %v35 = vld [vmem:[#allocation2 + $0x30] sm:$0xff]
    %v36 = vld [vmem:[#allocation2 + $0x38] sm:$0xff]
    %v37 = vld [vmem:[#allocation2 + $0x40] sm:$0xff]
    %v38 = vld [vmem:[#allocation2 + $0x48] sm:$0xff]
    %v39 = vld [vmem:[#allocation2 + $0x50] sm:$0xff]
    %v40 = vld [vmem:[#allocation2 + $0x58] sm:$0xff]
    %v41 = vld [vmem:[#allocation2 + $0x60] sm:$0xff]
    %v42 = vld [vmem:[#allocation2 + $0x68] sm:$0xff]
    %v43 = vld [vmem:[#allocation2 + $0x70] sm:$0xff]
    %v44 = vld [vmem:[#allocation2 + $0x78] sm:$0xff]
    %v45 = vld [vmem:[%s2] sm:$0x1]
    %v47 = vlaneseq
    %v48 = vshrl.u32 %v47, 7
    %v49 = vsub.s32 0, %v48
    %v50 = vrot.slane %v45, %v49
    %52 = vmatprep.subr.mxu0 0.0
    %53 = vmatpush1.msra.mxu0 %v29
    %54 = vmatprep.subr.mxu0 0.0
    %55 = vmatpush1.msra.mxu0 %v30
    %56 = vmatprep.subr.mxu0 0.0
    %57 = vmatpush1.msra.mxu0 %v31
    %58 = vmatprep.subr.mxu0 0.0
    %59 = vmatpush1.msra.mxu0 %v32
    %60 = vmatprep.subr.mxu0 0.0
    %61 = vmatpush1.msra.mxu0 %v33
    %62 = vmatprep.subr.mxu0 0.0
    %63 = vmatpush1.msra.mxu0 %v34
    %64 = vmatprep.subr.mxu0 0.0
    %65 = vmatpush1.msra.mxu0 %v35
    %66 = vmatprep.subr.mxu0 0.0
    %67 = vmatpush1.msra.mxu0 %v36
    %68 = vmatprep.subr.mxu0 0.0
    %69 = vmatpush1.msra.mxu0 %v37
    %70 = vmatprep.subr.mxu0 0.0
    %71 = vmatpush1.msra.mxu0 %v38
    %72 = vmatprep.subr.mxu0 0.0
    %73 = vmatpush1.msra.mxu0 %v39
    %74 = vmatprep.subr.mxu0 0.0
    %75 = vmatpush1.msra.mxu0 %v40
    %76 = vmatprep.subr.mxu0 0.0
    %77 = vmatpush1.msra.mxu0 %v41
    %78 = vmatprep.subr.mxu0 0.0
    %79 = vmatpush1.msra.mxu0 %v42
    %80 = vmatprep.subr.mxu0 0.0
    %81 = vmatpush1.msra.mxu0 %v43
    %82 = vmatprep.subr.mxu0 0.0
    %83 = vmatpush1.msra.mxu0 %v44
    %84 = vmatprep.subr.mxu0 0.0
    %85 = vmatpush1.msra.mxu0 0.0
    %86 = vmatprep.subr.mxu0 0.0
    %87 = vmatpush1.msra.mxu0 0.0
    %88 = vmatprep.subr.mxu0 0.0
    %89 = vmatpush1.msra.mxu0 0.0
    %90 = vmatprep.subr.mxu0 0.0
    %91 = vmatpush1.msra.mxu0 0.0
    %92 = vmatprep.subr.mxu0 0.0
    %93 = vmatpush1.msra.mxu0 0.0
    %94 = vmatprep.subr.mxu0 0.0
    %95 = vmatpush1.msra.mxu0 0.0
    %96 = vmatprep.subr.mxu0 0.0
    %97 = vmatpush1.msra.mxu0 0.0
    %98 = vmatprep.subr.mxu0 0.0
    %99 = vmatpush1.msra.mxu0 0.0
    %100 = vmatprep.subr.mxu0 0.0
    %101 = vmatpush1.msra.mxu0 0.0
    %102 = vmatprep.subr.mxu0 0.0
    %103 = vmatpush1.msra.mxu0 0.0
    %104 = vmatprep.subr.mxu0 0.0
    %105 = vmatpush1.msra.mxu0 0.0
    %106 = vmatprep.subr.mxu0 0.0
    %107 = vmatpush1.msra.mxu0 0.0
    %108 = vmatprep.subr.mxu0 0.0
    %109 = vmatpush1.msra.mxu0 0.0
    %110 = vmatprep.subr.mxu0 0.0
    %111 = vmatpush1.msra.mxu0 0.0
    %112 = vmatprep.subr.mxu0 0.0
    %113 = vmatpush1.msra.mxu0 0.0
    %114 = vmatprep.subr.mxu0 0.0
    %115 = vmatpush1.msra.mxu0 0.0
    %116 = vmatprep.mubr.f32.mxu0 0.0
    %117 = vmatmul.mubr.f32.gmra.mrb[0].mxu0 %v28
    %v118 = vpop.f32.mrb[0].mxu0
    %v119 = vadd.f32 %v50, %v118
    %v120 = vpop.f32.mrb[0].mxu0
    %121 = vdwg.mxu0
    %122 = vst [vmem:[%s3] sm:$0xff] %v119
    // Predicated region
    $region18: #{_forward.1} parent=1 // pred_check
      _
    $region19: #{_forward.1} parent=1 // pred_check_branch
      %124 = sbr.rel (0) target = $region21
    $region20: #{_forward.1} parent=1 // pred_region
      _
    $region21: #{_forward.1} parent=1 // pred_fallthru
      _
    // Predicated region
    $region22: #{_forward.1} parent=1 // pred_check
      _
    $region23: #{_forward.1} parent=1 // pred_check_branch
      %126 = sbr.rel (0) target = $region25
    $region24: #{_forward.1} parent=1 // pred_region
      _
    $region25: #{_forward.1} parent=1 // pred_fallthru
      _
    %127 = vsyncpa [#allocation3], 1

</llo_original>
